<compile_context>
chip_gen: v5e
topology: v5e:2x2
jax: 0.10.0
libtpu: 0.0.40
codegen_flags: <defaults>
</compile_context>

<pallas_src>
import jax
import jax.numpy as jnp
from jax.experimental import pallas as pl
from jax.experimental.pallas import tpu as pltpu


def _decoder_kernel(z_ref, w1_ref, b1_ref, w2_ref, b2_ref,
                    wr_ref, br_ref, wp_ref, bp_ref,
                    py_ref, state_ref, pt_ref):
    z = z_ref[...]                                           # [TB, z_units], io dtype

    # state / pt heads.  MXU consumes io-dtype operands directly; accumulation
    # and all VPU work (bias add) stay f32 (v5e has no bf16 VPU).
    state = jnp.dot(z, wr_ref[...], preferred_element_type=jnp.float32) + br_ref[...]
    pt = jnp.dot(z, wp_ref[...], preferred_element_type=jnp.float32) + bp_ref[...]

    # py head.  The embed_t contribution is a constant row folded into b1_eff
    # (dead onehot path), so the first Linear reduces to z @ w1[:z_units].
    h = jnp.maximum(
        jnp.dot(z, w1_ref[...], preferred_element_type=jnp.float32) + b1_ref[...], 0.0)
    py = jnp.dot(h.astype(w2_ref.dtype), w2_ref[...],
                 preferred_element_type=jnp.float32) + b2_ref[...]

    py_ref[...] = py.astype(py_ref.dtype)
    state_ref[...] = state.astype(state_ref.dtype)
    pt_ref[...] = pt.astype(pt_ref.dtype)


def fuse_params(params, z_units=64, dtype=jnp.float32, assume_discarded_scatter=True):
    """One-time weight fusion (do NOT call per forward).

    `assume_discarded_scatter=True` encodes the upstream PyTorch behavior that
    `scatter` (non-in-place, result discarded) leaves onehot_t all zeros, so
    embed_t == be and its effect through the first py Linear is the constant
    row  be @ w1[z_units:].  If the reference is ever "fixed" to `scatter_`,
    this fold becomes invalid.
    """
    if not assume_discarded_scatter:
        raise NotImplementedError(
            "fuse_params only implements the reference forward as written "
            "(scatter result discarded => embed_t is a constant row).")

    (wr, br, wp, bp, we, be, w1, b1, w2, b2) = params
    w1z = w1[:z_units]                               # [z_units, z_units]
    b1_eff = b1 + be @ w1[z_units:]                  # [1, z_units], dead-path fold

    # Weights in the I/O dtype (bf16 halves HBM traffic on v6e/v7x);
    # biases stay f32 -- they are added to f32 MXU accumulators.
    f32 = jnp.float32
    return (w1z.astype(dtype), b1_eff.astype(f32),
            w2.astype(dtype), b2.astype(f32),
            wr.astype(dtype), br.astype(f32),
            wp.astype(dtype), bp.astype(f32))


def _pick_batch_tile(B):
    """Large tiles amortize the ~0.35us per-grid-step overhead; keep >= 2 grid
    steps at large B (v7x has 2 TensorCores); 16-row granularity keeps the
    second-minor dim natively packed for both f32 and bf16."""
    if B <= 512:
        return B                                   # single step: latency-dominated
    tb = min(2048, -(-B // 2))                     # cap, but keep >= 2 steps
    return max(16, (tb // 16) * 16)


def decoder_ce_fusion_forward(z, _t, fused, *, batch_tile=None):
    """z: [B, z_units].  _t: [B, 1] int (dead in the reference forward).

    Returns (py, state, pt) exactly matching the PyTorch module's forward.
    """
    w1z, b1, w2, b2, wr, br, wp, bp = fused
    z_units = w1z.shape[0]
    action_size = w2.shape[1]
    state_size = wr.shape[1]
    num_treatment = wp.shape[1]
    B = z.shape[0]

    io_dtype = w1z.dtype
    z = z.astype(io_dtype)

    TB = batch_tile if batch_tile is not None else _pick_batch_tile(B)
    grid = (pl.cdiv(B, TB),)

    # Advisory cost estimate: tiny-flop, HBM-bound custom call.
    head_cols = action_size + state_size + num_treatment
    itemsize = jnp.dtype(io_dtype).itemsize
    flops = 2 * B * z_units * (z_units + head_cols) + 2 * B * z_units * action_size
    w_bytes = itemsize * z_units * (z_units + head_cols) + 4 * (z_units + head_cols)
    bytes_accessed = int(B * itemsize * (z_units + head_cols) + w_bytes)

    batch_map = lambda i: (i, 0)       # batch-tiled arrays
    const_map = lambda i: (0, 0)       # resident weights / biases

    py, state, pt = pl.pallas_call(
        _decoder_kernel,
        out_shape=(
            jax.ShapeDtypeStruct((B, action_size), io_dtype),
            jax.ShapeDtypeStruct((B, state_size), io_dtype),
            jax.ShapeDtypeStruct((B, num_treatment), io_dtype),
        ),
        grid=grid,
        in_specs=[
            pl.BlockSpec((TB, z_units), batch_map),             # z
            pl.BlockSpec((z_units, z_units), const_map),        # w1[:z_units]
            pl.BlockSpec((1, z_units), const_map),              # b1_eff (f32)
            pl.BlockSpec((z_units, action_size), const_map),    # w2
            pl.BlockSpec((1, action_size), const_map),          # b2 (f32)
            pl.BlockSpec((z_units, state_size), const_map),     # wr
            pl.BlockSpec((1, state_size), const_map),           # br (f32)
            pl.BlockSpec((z_units, num_treatment), const_map),  # wp
            pl.BlockSpec((1, num_treatment), const_map),        # bp (f32)
        ],
        out_specs=[
            pl.BlockSpec((TB, action_size), batch_map),
            pl.BlockSpec((TB, state_size), batch_map),
            pl.BlockSpec((TB, num_treatment), batch_map),
        ],
        compiler_params=pltpu.CompilerParams(dimension_semantics=("parallel",)),
        cost_estimate=pl.CostEstimate(
            flops=int(flops), transcendentals=0, bytes_accessed=bytes_accessed),
    )(z, w1z, b1, w2, b2, wr, br, wp, bp)
    return py, state, pt


def init_params(key, state_size, action_size, num_treatment=2, z_units=64):
    """Deterministic PyTorch-style init; weights stored [in, out], biases [1, out]."""
    def linear(key, fan_in, fan_out):
        kw, kb = jax.random.split(key)
        bound = 1.0 / (fan_in ** 0.5)
        w = jax.random.uniform(kw, (fan_in, fan_out), jnp.float32, -bound, bound)
        b = jax.random.uniform(kb, (1, fan_out), jnp.float32, -bound, bound)
        return w, b

    k = jax.random.split(key, 5)
    embed_dim = num_treatment * 16
    wr, br = linear(k[0], z_units, state_size)                 # reoconstruct
    wp, bp = linear(k[1], z_units, num_treatment)              # pt
    we, be = linear(k[2], num_treatment, embed_dim)            # embed_t
    w1, b1 = linear(k[3], z_units + embed_dim, z_units)        # py[0]
    w2, b2 = linear(k[4], z_units, action_size)                # py[2]
    return (wr, br, wp, bp, we, be, w1, b1, w2, b2)


def reference_forward(z, _t, params):
    """Pure-JAX reference mirroring the PyTorch forward exactly."""
    (wr, br, wp, bp, we, be, w1, b1, w2, b2) = params
    state = z @ wr + br
    pt = z @ wp + bp
    onehot_t = jnp.zeros((pt.shape[0], wp.shape[1]), jnp.float32)  # scatter result discarded
    embed_t = onehot_t @ we + be
    h = jnp.concatenate([z, embed_t], axis=-1) @ w1 + b1
    h = jnp.maximum(h, 0.0)
    py = h @ w2 + b2
    return py, state, pt


if __name__ == "__main__":
    state_size, action_size, num_treatment, z_units = 32, 8, 2, 64

    key = jax.random.PRNGKey(0)
    kz, kt, kp, kz2 = jax.random.split(key, 4)
    params = init_params(kp, state_size, action_size, num_treatment, z_units)

    # ---- case 1: small batch, f32, single grid step ----
    B = 8
    z = jax.random.normal(kz, (B, z_units), jnp.float32)
    _t = jax.random.randint(kt, (B, 1), 0, num_treatment, jnp.int32)
    fused = jax.block_until_ready(fuse_params(params, z_units=z_units))

    py, state, pt = jax.block_until_ready(decoder_ce_fusion_forward(z, _t, fused))
    py_r, state_r, pt_r = reference_forward(z, _t, params)
    assert jnp.allclose(py, py_r, atol=1e-5), "py mismatch (f32)"
    assert jnp.allclose(state, state_r, atol=1e-5), "state mismatch (f32)"
    assert jnp.allclose(pt, pt_r, atol=1e-5), "pt mismatch (f32)"

    # ---- case 2: ragged last batch tile (B % TB != 0, TB > 8), f32 ----
    B2 = 200
    z2 = jax.random.normal(kz2, (B2, z_units), jnp.float32)
    _t2 = jnp.zeros((B2, 1), jnp.int32)
    py2, state2, pt2 = jax.block_until_ready(
        decoder_ce_fusion_forward(z2, _t2, fused, batch_tile=64))
    py2_r, state2_r, pt2_r = reference_forward(z2, _t2, params)
    assert jnp.allclose(py2, py2_r, atol=1e-5), "py mismatch (ragged)"
    assert jnp.allclose(state2, state2_r, atol=1e-5), "state mismatch (ragged)"
    assert jnp.allclose(pt2, pt2_r, atol=1e-5), "pt mismatch (ragged)"

    # ---- case 3: bf16 I/O fast path (v6e/v7x), f32 accumulation ----
    fused_bf16 = jax.block_until_ready(
        fuse_params(params, z_units=z_units, dtype=jnp.bfloat16))
    py3, state3, pt3 = jax.block_until_ready(
        decoder_ce_fusion_forward(z, _t, fused_bf16))
    assert jnp.allclose(py3.astype(jnp.float32), py_r, atol=1e-1), "py mismatch (bf16)"
    assert jnp.allclose(state3.astype(jnp.float32), state_r, atol=1e-1), "state mismatch (bf16)"
    assert jnp.allclose(pt3.astype(jnp.float32), pt_r, atol=1e-1), "pt mismatch (bf16)"

    print("KERNEL_OK")
</pallas_src>

<mosaic_0001>
module attributes {stable_mosaic.version = 11 : i64} {
  func.func @_decoder_kernel(%arg0: i32, %arg1: memref<8x64xf32, #tpu.memory_space<vmem>>, %arg2: memref<64x64xf32, #tpu.memory_space<vmem>>, %arg3: memref<1x64xf32, #tpu.memory_space<vmem>>, %arg4: memref<64x8xf32, #tpu.memory_space<vmem>>, %arg5: memref<1x8xf32, #tpu.memory_space<vmem>>, %arg6: memref<64x32xf32, #tpu.memory_space<vmem>>, %arg7: memref<1x32xf32, #tpu.memory_space<vmem>>, %arg8: memref<64x2xf32, #tpu.memory_space<vmem>>, %arg9: memref<1x2xf32, #tpu.memory_space<vmem>>, %arg10: memref<8x8xf32, #tpu.memory_space<vmem>>, %arg11: memref<8x32xf32, #tpu.memory_space<vmem>>, %arg12: memref<8x2xf32, #tpu.memory_space<vmem>>) attributes {dimension_semantics = [#tpu.dimension_semantics<parallel>], iteration_bounds = array<i64: 1>, scalar_prefetch = 0 : i64, scratch_operands = 0 : i64, tpu.core_type = #tpu.core_type<tc>, window_params = [{transform_indices = @transform_0, window_bounds = array<i64: 8, 64>}, {pipeline_mode = #tpu.pipeline_mode<synchronous>, transform_indices = @transform_1, window_bounds = array<i64: 64, 64>}, {pipeline_mode = #tpu.pipeline_mode<synchronous>, transform_indices = @transform_2, window_bounds = array<i64: 1, 64>}, {pipeline_mode = #tpu.pipeline_mode<synchronous>, transform_indices = @transform_3, window_bounds = array<i64: 64, 8>}, {pipeline_mode = #tpu.pipeline_mode<synchronous>, transform_indices = @transform_4, window_bounds = array<i64: 1, 8>}, {pipeline_mode = #tpu.pipeline_mode<synchronous>, transform_indices = @transform_5, window_bounds = array<i64: 64, 32>}, {pipeline_mode = #tpu.pipeline_mode<synchronous>, transform_indices = @transform_6, window_bounds = array<i64: 1, 32>}, {pipeline_mode = #tpu.pipeline_mode<synchronous>, transform_indices = @transform_7, window_bounds = array<i64: 64, 2>}, {pipeline_mode = #tpu.pipeline_mode<synchronous>, transform_indices = @transform_8, window_bounds = array<i64: 1, 2>}, {transform_indices = @transform_9, window_bounds = array<i64: 8, 8>}, {transform_indices = @transform_10, window_bounds = array<i64: 8, 32>}, {transform_indices = @transform_11, window_bounds = array<i64: 8, 2>}]} {
    %c0 = arith.constant 0 : index
    %c0_0 = arith.constant 0 : index
    %0 = vector.load %arg1[%c0, %c0_0] : memref<8x64xf32, #tpu.memory_space<vmem>>, vector<8x64xf32>
    %c0_1 = arith.constant 0 : index
    %c0_2 = arith.constant 0 : index
    %1 = vector.load %arg6[%c0_1, %c0_2] : memref<64x32xf32, #tpu.memory_space<vmem>>, vector<64x32xf32>
    %cst = arith.constant dense<0.000000e+00> : vector<8x32xf32>
    %2 = tpu.matmul %0, %1, %cst {dimension_numbers = #tpu.dot_dimension_numbers<[1], [0], [0], [1], [0, 0, 1, 1], [], []>} : vector<8x64xf32>, vector<64x32xf32>, vector<8x32xf32> -> vector<8x32xf32>
    %c0_3 = arith.constant 0 : index
    %c0_4 = arith.constant 0 : index
    %3 = vector.load %arg7[%c0_3, %c0_4] : memref<1x32xf32, #tpu.memory_space<vmem>>, vector<1x32xf32>
    %4 = vector.broadcast %3 : vector<1x32xf32> to vector<8x32xf32>
    %5 = arith.addf %2, %4 : vector<8x32xf32>
    %c0_5 = arith.constant 0 : index
    %c0_6 = arith.constant 0 : index
    %6 = vector.load %arg8[%c0_5, %c0_6] : memref<64x2xf32, #tpu.memory_space<vmem>>, vector<64x2xf32>
    %cst_7 = arith.constant dense<0.000000e+00> : vector<8x2xf32>
    %7 = tpu.matmul %0, %6, %cst_7 {dimension_numbers = #tpu.dot_dimension_numbers<[1], [0], [0], [1], [0, 0, 1, 1], [], []>} : vector<8x64xf32>, vector<64x2xf32>, vector<8x2xf32> -> vector<8x2xf32>
    %c0_8 = arith.constant 0 : index
    %c0_9 = arith.constant 0 : index
    %8 = vector.load %arg9[%c0_8, %c0_9] : memref<1x2xf32, #tpu.memory_space<vmem>>, vector<1x2xf32>
    %9 = vector.broadcast %8 : vector<1x2xf32> to vector<8x2xf32>
    %10 = arith.addf %7, %9 : vector<8x2xf32>
    %c0_10 = arith.constant 0 : index
    %c0_11 = arith.constant 0 : index
    %11 = vector.load %arg2[%c0_10, %c0_11] : memref<64x64xf32, #tpu.memory_space<vmem>>, vector<64x64xf32>
    %cst_12 = arith.constant dense<0.000000e+00> : vector<8x64xf32>
    %12 = tpu.matmul %0, %11, %cst_12 {dimension_numbers = #tpu.dot_dimension_numbers<[1], [0], [0], [1], [0, 0, 1, 1], [], []>} : vector<8x64xf32>, vector<64x64xf32>, vector<8x64xf32> -> vector<8x64xf32>
    %c0_13 = arith.constant 0 : index
    %c0_14 = arith.constant 0 : index
    %13 = vector.load %arg3[%c0_13, %c0_14] : memref<1x64xf32, #tpu.memory_space<vmem>>, vector<1x64xf32>
    %14 = vector.broadcast %13 : vector<1x64xf32> to vector<8x64xf32>
    %15 = arith.addf %12, %14 : vector<8x64xf32>
    %cst_15 = arith.constant 0.000000e+00 : f32
    %16 = vector.broadcast %cst_15 : f32 to vector<8x64xf32>
    %17 = arith.maximumf %15, %16 : vector<8x64xf32>
    %c0_16 = arith.constant 0 : index
    %c0_17 = arith.constant 0 : index
    %18 = vector.load %arg4[%c0_16, %c0_17] : memref<64x8xf32, #tpu.memory_space<vmem>>, vector<64x8xf32>
    %cst_18 = arith.constant dense<0.000000e+00> : vector<8x8xf32>
    %19 = tpu.matmul %17, %18, %cst_18 {dimension_numbers = #tpu.dot_dimension_numbers<[1], [0], [0], [1], [0, 0, 1, 1], [], []>} : vector<8x64xf32>, vector<64x8xf32>, vector<8x8xf32> -> vector<8x8xf32>
    %c0_19 = arith.constant 0 : index
    %c0_20 = arith.constant 0 : index
    %20 = vector.load %arg5[%c0_19, %c0_20] : memref<1x8xf32, #tpu.memory_space<vmem>>, vector<1x8xf32>
    %21 = vector.broadcast %20 : vector<1x8xf32> to vector<8x8xf32>
    %22 = arith.addf %19, %21 : vector<8x8xf32>
    %c0_21 = arith.constant 0 : index
    %c0_22 = arith.constant 0 : index
    %23 = vector.load %arg10[%c0_21, %c0_22] : memref<8x8xf32, #tpu.memory_space<vmem>>, vector<8x8xf32>
    tpu.vector_store %arg10[%c0_21, %c0_22], %22 {strides = array<i32>} : memref<8x8xf32, #tpu.memory_space<vmem>>, vector<8x8xf32>,
    %c0_23 = arith.constant 0 : index
    %c0_24 = arith.constant 0 : index
    %24 = vector.load %arg11[%c0_23, %c0_24] : memref<8x32xf32, #tpu.memory_space<vmem>>, vector<8x32xf32>
    tpu.vector_store %arg11[%c0_23, %c0_24], %5 {strides = array<i32>} : memref<8x32xf32, #tpu.memory_space<vmem>>, vector<8x32xf32>,
    %c0_25 = arith.constant 0 : index
    %c0_26 = arith.constant 0 : index
    %25 = vector.load %arg12[%c0_25, %c0_26] : memref<8x2xf32, #tpu.memory_space<vmem>>, vector<8x2xf32>
    tpu.vector_store %arg12[%c0_25, %c0_26], %10 {strides = array<i32>} : memref<8x2xf32, #tpu.memory_space<vmem>>, vector<8x2xf32>,
    return
  }
  func.func @transform_0(%arg0: i32) -> (i32, i32) {
    %c0_i32 = arith.constant 0 : i32
    %c0_i32_0 = arith.constant 0 : i32
    return %arg0, %c0_i32 : i32, i32
  }
  func.func @transform_1(%arg0: i32) -> (i32, i32) {
    %c0_i32 = arith.constant 0 : i32
    %c0_i32_0 = arith.constant 0 : i32
    %c0_i32_1 = arith.constant 0 : i32
    return %c0_i32, %c0_i32_0 : i32, i32
  }
  func.func @transform_2(%arg0: i32) -> (i32, i32) {
    %c0_i32 = arith.constant 0 : i32
    %c0_i32_0 = arith.constant 0 : i32
    %c0_i32_1 = arith.constant 0 : i32
    return %c0_i32, %c0_i32_0 : i32, i32
  }
  func.func @transform_3(%arg0: i32) -> (i32, i32) {
    %c0_i32 = arith.constant 0 : i32
    %c0_i32_0 = arith.constant 0 : i32
    %c0_i32_1 = arith.constant 0 : i32
    return %c0_i32, %c0_i32_0 : i32, i32
  }
  func.func @transform_4(%arg0: i32) -> (i32, i32) {
    %c0_i32 = arith.constant 0 : i32
    %c0_i32_0 = arith.constant 0 : i32
    %c0_i32_1 = arith.constant 0 : i32
    return %c0_i32, %c0_i32_0 : i32, i32
  }
  func.func @transform_5(%arg0: i32) -> (i32, i32) {
    %c0_i32 = arith.constant 0 : i32
    %c0_i32_0 = arith.constant 0 : i32
    %c0_i32_1 = arith.constant 0 : i32
    return %c0_i32, %c0_i32_0 : i32, i32
  }
  func.func @transform_6(%arg0: i32) -> (i32, i32) {
    %c0_i32 = arith.constant 0 : i32
    %c0_i32_0 = arith.constant 0 : i32
    %c0_i32_1 = arith.constant 0 : i32
    return %c0_i32, %c0_i32_0 : i32, i32
  }
  func.func @transform_7(%arg0: i32) -> (i32, i32) {
    %c0_i32 = arith.constant 0 : i32
    %c0_i32_0 = arith.constant 0 : i32
    %c0_i32_1 = arith.constant 0 : i32
    return %c0_i32, %c0_i32_0 : i32, i32
  }
  func.func @transform_8(%arg0: i32) -> (i32, i32) {
    %c0_i32 = arith.constant 0 : i32
    %c0_i32_0 = arith.constant 0 : i32
    %c0_i32_1 = arith.constant 0 : i32
    return %c0_i32, %c0_i32_0 : i32, i32
  }
  func.func @transform_9(%arg0: i32) -> (i32, i32) {
    %c0_i32 = arith.constant 0 : i32
    %c0_i32_0 = arith.constant 0 : i32
    return %arg0, %c0_i32 : i32, i32
  }
  func.func @transform_10(%arg0: i32) -> (i32, i32) {
    %c0_i32 = arith.constant 0 : i32
    %c0_i32_0 = arith.constant 0 : i32
    return %arg0, %c0_i32 : i32, i32
  }
  func.func @transform_11(%arg0: i32) -> (i32, i32) {
    %c0_i32 = arith.constant 0 : i32
    %c0_i32_0 = arith.constant 0 : i32
    return %arg0, %c0_i32 : i32, i32
  }
}

</mosaic_0001>

<llo_original>
// kernel: tpu_custom_call.1
$region0: #{tpu_custom_call.1}
  #allocation0 [shape = 'u32[]', space=smem, size = 0x4, offset = 0x4, fixed_abs, tag = 'smem constant byte address 0x4 - core index']
  #allocation1 [shape = 'u32[72,128]{1,0:T(1,128)}', space=vmem, size = 0x9000, scoped, tag = 'internal scratch']
  %s0 = inlined_call_operand.vmem [shape: f32[8,64], index: 0, kind: input, shape index: {}]
  %s1 = inlined_call_operand.vmem [shape: f32[64,64], index: 1, kind: input, shape index: {}]
  %s2 = inlined_call_operand.vmem [shape: f32[1,64], index: 2, kind: input, shape index: {}]
  %s3 = inlined_call_operand.vmem [shape: f32[64,8], index: 3, kind: input, shape index: {}]
  %s4 = inlined_call_operand.vmem [shape: f32[1,8], index: 4, kind: input, shape index: {}]
  %s5 = inlined_call_operand.vmem [shape: f32[64,32], index: 5, kind: input, shape index: {}]
  %s6 = inlined_call_operand.vmem [shape: f32[1,32], index: 6, kind: input, shape index: {}]
  %s7 = inlined_call_operand.vmem [shape: f32[64,2], index: 7, kind: input, shape index: {}]
  %s8 = inlined_call_operand.vmem [shape: f32[1,2], index: 8, kind: input, shape index: {}]
  %s9 = inlined_call_operand.hbm [shape: f32[8,8], index: 9, kind: output, shape index: {0}]
  %s10 = inlined_call_operand.hbm [shape: f32[8,32], index: 10, kind: output, shape index: {1}]
  %s11 = inlined_call_operand.vmem [shape: f32[8,2], index: 11, kind: output, shape index: {2}]
  %12 = xla_tuple %s9, %s10, %s11
  %s13 = sld [smem:[#allocation0]]
  $region62: #{tpu_custom_call.1} parent=0
    _
  %s15 = ssub.s32 1, %s13
  %s16 = scalar_select 0, %s15, %s13
  $region1: #{tpu_custom_call.1} parent=0
    #allocation2 [shape = 'u8[4096]{0}', space=vmem, size = 0x1000, scoped, tag = 'output window, operand 0, single buffered']
    #allocation3 [shape = 's32[1]{0}', space=sflag, size = 0x4, scoped, tag = 'scoped memory for tpu_custom_call.1']
    #allocation4 [shape = 'u8[4096]{0}', space=vmem, size = 0x1000, scoped, tag = 'output window, operand 1, single buffered']
    #allocation5 [shape = 's32[1]{0}', space=sflag, size = 0x4, scoped, tag = 'scoped memory for tpu_custom_call.1']
    %17 = vsyncpa [#allocation3], 0
    %18 = vsyncpa [#allocation5], 0
    // Predicated region
    $region2: #{tpu_custom_call.1} parent=1 // pred_check
      _
    $region3: #{tpu_custom_call.1} parent=1 // pred_check_branch
      %20 = sbr.rel (0) target = $region5
    $region4: #{tpu_custom_call.1} parent=1 // pred_region
      _
    $region5: #{tpu_custom_call.1} parent=1 // pred_fallthru
      _
    // Predicated region
    $region6: #{tpu_custom_call.1} parent=1 // pred_check
      _
    $region7: #{tpu_custom_call.1} parent=1 // pred_check_branch
      %22 = sbr.rel (0) target = $region9
    $region8: #{tpu_custom_call.1} parent=1 // pred_region
      _
    $region9: #{tpu_custom_call.1} parent=1 // pred_fallthru
      _
    // Predicated region
    $region10: #{tpu_custom_call.1} parent=1 // pred_check
      _
    $region11: #{tpu_custom_call.1} parent=1 // pred_check_branch
      %24 = sbr.rel (0) target = $region13
    $region12: #{tpu_custom_call.1} parent=1 // pred_region
      _
    $region13: #{tpu_custom_call.1} parent=1 // pred_fallthru
      _
    // Predicated region
    $region14: #{tpu_custom_call.1} parent=1 // pred_check
      _
    $region15: #{tpu_custom_call.1} parent=1 // pred_check_branch
      %26 = sbr.rel (0) target = $region17
    $region16: #{tpu_custom_call.1} parent=1 // pred_region
      _
    $region17: #{tpu_custom_call.1} parent=1 // pred_fallthru
      _
    // Predicated region
    $region18: #{tpu_custom_call.1} parent=1 // pred_check
      _
    $region19: #{tpu_custom_call.1} parent=1 // pred_check_branch
      %28 = sbr.rel (0) target = $region21
    $region20: #{tpu_custom_call.1} parent=1 // pred_region
      _
    $region21: #{tpu_custom_call.1} parent=1 // pred_fallthru
      _
    // Predicated region
    $region22: #{tpu_custom_call.1} parent=1 // pred_check
      _
    $region23: #{tpu_custom_call.1} parent=1 // pred_check_branch
      %30 = sbr.rel (0) target = $region25
    $region24: #{tpu_custom_call.1} parent=1 // pred_region
      _
    $region25: #{tpu_custom_call.1} parent=1 // pred_fallthru
      _
    // Predicated region
    $region26: #{tpu_custom_call.1} parent=1 // pred_check
      _
    $region27: #{tpu_custom_call.1} parent=1 // pred_check_branch
      %32 = sbr.rel (0) target = $region29
    $region28: #{tpu_custom_call.1} parent=1 // pred_region
      _
    $region29: #{tpu_custom_call.1} parent=1 // pred_fallthru
      _
    // Predicated region
    $region30: #{tpu_custom_call.1} parent=1 // pred_check
      _
    $region31: #{tpu_custom_call.1} parent=1 // pred_check_branch
      %34 = sbr.rel (0) target = $region33
    $region32: #{tpu_custom_call.1} parent=1 // pred_region
      _
    $region33: #{tpu_custom_call.1} parent=1 // pred_fallthru
      _
    // Predicated region
    $region34: #{tpu_custom_call.1} parent=1 // pred_check
      _
    $region35: #{tpu_custom_call.1} parent=1 // pred_check_branch
      %36 = sbr.rel (0) target = $region37
    $region36: #{tpu_custom_call.1} parent=1 // pred_region
      _
    $region37: #{tpu_custom_call.1} parent=1 // pred_fallthru
      _
    %v37 = vld [vmem:[%s0] sm:$0xff]
    %v38 = vld [vmem:[%s5] sm:$0xff]
    %v39 = vld [vmem:[%s5 + $0x8] sm:$0xff]
    %v40 = vld [vmem:[%s5 + $0x10] sm:$0xff]
    %v41 = vld [vmem:[%s5 + $0x18] sm:$0xff]
    %v42 = vld [vmem:[%s5 + $0x20] sm:$0xff]
    %v43 = vld [vmem:[%s5 + $0x28] sm:$0xff]
    %v44 = vld [vmem:[%s5 + $0x30] sm:$0xff]
    %v45 = vld [vmem:[%s5 + $0x38] sm:$0xff]
    %v46 = vld [vmem:[%s6] sm:$0x1]
    %v48 = vperm.slane %v46, 0
    %vm50 = vcmask 523264
    %v52 = vsel %vm50, %v37, 0
    %54 = vmatpush.msra.mxu0 0.0
    %55 = vmatpush.msra.mxu0 0.0
    %56 = vmatpush.msra.mxu0 0.0
    %57 = vmatpush.msra.mxu0 0.0
    %58 = vmatpush.msra.mxu0 0.0
    %59 = vmatpush.msra.mxu0 0.0
    %60 = vmatpush.msra.mxu0 0.0
    %61 = vmatpush.msra.mxu0 0.0
    %62 = vmatpush.msra.mxu0 %v45
    %63 = vmatpush.msra.mxu0 %v44
    %64 = vmatpush.msra.mxu0 %v43
    %65 = vmatpush.msra.mxu0 %v42
    %66 = vmatpush.msra.mxu0 %v41
    %67 = vmatpush.msra.mxu0 %v40
    %68 = vmatpush.msra.mxu0 %v39
    %69 = vmatpush.msra.mxu0 %v38
    %70 = vmatmul.f32.gmra.mxu0 %v52
    %v71 = vpop.f32.mrf.mxu0
    %v72 = vadd.f32 %v48, %v71
    %73 = vdwg.mxu0
    %v74 = vld [vmem:[%s7] sm:$0xff]
    %v75 = vld [vmem:[%s7 + $0x8] sm:$0xff]
    %v76 = vld [vmem:[%s7 + $0x10] sm:$0xff]
    %v77 = vld [vmem:[%s7 + $0x18] sm:$0xff]
    %v78 = vld [vmem:[%s7 + $0x20] sm:$0xff]
    %v79 = vld [vmem:[%s7 + $0x28] sm:$0xff]
    %v80 = vld [vmem:[%s7 + $0x30] sm:$0xff]
    %v81 = vld [vmem:[%s7 + $0x38] sm:$0xff]
    %v82 = vld [vmem:[%s8] sm:$0x1]
    %v84 = vperm.slane %v82, 0
    %86 = vmatpush.msra.mxu0 0.0
    %87 = vmatpush.msra.mxu0 0.0
    %88 = vmatpush.msra.mxu0 0.0
    %89 = vmatpush.msra.mxu0 0.0
    %90 = vmatpush.msra.mxu0 0.0
    %91 = vmatpush.msra.mxu0 0.0
    %92 = vmatpush.msra.mxu0 0.0
    %93 = vmatpush.msra.mxu0 0.0
    %94 = vmatpush.msra.mxu0 %v81
    %95 = vmatpush.msra.mxu0 %v80
    %96 = vmatpush.msra.mxu0 %v79
    %97 = vmatpush.msra.mxu0 %v78
    %98 = vmatpush.msra.mxu0 %v77
    %99 = vmatpush.msra.mxu0 %v76
    %100 = vmatpush.msra.mxu0 %v75
    %101 = vmatpush.msra.mxu0 %v74
    %102 = vmatmul.f32.gmra.mxu0 %v52
    %v103 = vpop.f32.mrf.mxu0
    %v104 = vadd.f32 %v84, %v103
    %105 = vdwg.mxu0
    %v106 = vld [vmem:[%s1] sm:$0xff]
    %v107 = vld [vmem:[%s1 + $0x8] sm:$0xff]
    %v108 = vld [vmem:[%s1 + $0x10] sm:$0xff]
    %v109 = vld [vmem:[%s1 + $0x18] sm:$0xff]
    %v110 = vld [vmem:[%s1 + $0x20] sm:$0xff]
    %v111 = vld [vmem:[%s1 + $0x28] sm:$0xff]
    %v112 = vld [vmem:[%s1 + $0x30] sm:$0xff]
    %v113 = vld [vmem:[%s1 + $0x38] sm:$0xff]
    %v114 = vld [vmem:[%s2] sm:$0x1]
    %v116 = vperm.slane %v114, 0
    %118 = vmatpush.msra.mxu0 0.0
    %119 = vmatpush.msra.mxu0 0.0
    %120 = vmatpush.msra.mxu0 0.0
    %121 = vmatpush.msra.mxu0 0.0
    %122 = vmatpush.msra.mxu0 0.0
    %123 = vmatpush.msra.mxu0 0.0
    %124 = vmatpush.msra.mxu0 0.0
    %125 = vmatpush.msra.mxu0 0.0
    %126 = vmatpush.msra.mxu0 %v113
    %127 = vmatpush.msra.mxu0 %v112
    %128 = vmatpush.msra.mxu0 %v111
    %129 = vmatpush.msra.mxu0 %v110
    %130 = vmatpush.msra.mxu0 %v109
    %131 = vmatpush.msra.mxu0 %v108
    %132 = vmatpush.msra.mxu0 %v107
    %133 = vmatpush.msra.mxu0 %v106
    %134 = vmatmul.f32.gmra.mxu0 %v52
    %v135 = vpop.f32.mrf.mxu0
    %v136 = vadd.f32 %v116, %v135
    %137 = vdwg.mxu0
    %v138 = vmax.f32 %v136, 0.0
    %v139 = vld [vmem:[%s3] sm:$0xff]
    %v140 = vld [vmem:[%s3 + $0x8] sm:$0xff]
    %v141 = vld [vmem:[%s3 + $0x10] sm:$0xff]
    %v142 = vld [vmem:[%s3 + $0x18] sm:$0xff]
    %v143 = vld [vmem:[%s3 + $0x20] sm:$0xff]
    %v144 = vld [vmem:[%s3 + $0x28] sm:$0xff]
    %v145 = vld [vmem:[%s3 + $0x30] sm:$0xff]
    %v146 = vld [vmem:[%s3 + $0x38] sm:$0xff]
    %v147 = vld [vmem:[%s4] sm:$0x1]
    %v149 = vperm.slane %v147, 0
    %v152 = vsel %vm50, %v138, 0
    %154 = vmatpush.msra.mxu0 0.0
    %155 = vmatpush.msra.mxu0 0.0
    %156 = vmatpush.msra.mxu0 0.0
    %157 = vmatpush.msra.mxu0 0.0
    %158 = vmatpush.msra.mxu0 0.0
    %159 = vmatpush.msra.mxu0 0.0
    %160 = vmatpush.msra.mxu0 0.0
    %161 = vmatpush.msra.mxu0 0.0
    %162 = vmatpush.msra.mxu0 %v146
    %163 = vmatpush.msra.mxu0 %v145
    %164 = vmatpush.msra.mxu0 %v144
    %165 = vmatpush.msra.mxu0 %v143
    %166 = vmatpush.msra.mxu0 %v142
    %167 = vmatpush.msra.mxu0 %v141
    %168 = vmatpush.msra.mxu0 %v140
    %169 = vmatpush.msra.mxu0 %v139
    %170 = vmatmul.f32.gmra.mxu0 %v152
    %v171 = vpop.f32.mrf.mxu0
    %v172 = vadd.f32 %v149, %v171
    %173 = vdwg.mxu0
    %vm174 = vcmask 64512
    %175 = vst.msk [vmem:[#allocation2] sm:$0xff] %vm174, %v172
    %vm176 = vcmask 261120
    %177 = vst.msk [vmem:[#allocation4] sm:$0xff] %vm176, %v72
    %vm178 = vcmask 15360
    %179 = vst.msk [vmem:[%s11] sm:$0xff] %vm178, %v104
    // Predicated region
    $region38: #{tpu_custom_call.1} parent=1 // pred_check
      _
    $region39: #{tpu_custom_call.1} parent=1 // pred_check_branch
      %181 = sbr.rel (0) target = $region41
    $region40: #{tpu_custom_call.1} parent=1 // pred_region
      %183 = vsyncadd [#allocation3], 0
      %s185 = sshll.u32 [#allocation2], 4
      %s186 = int_to_ptr.vmem [resolvable:$true] %s185
      %s187 = sshll.u32 %s9, 4
      %s188 = int_to_ptr.hbm [resolvable:$true] %s187
      %190 = dma.vmem_to_hbm [thread:$0]  %s186, 128, %s188, [#allocation3]
    $region41: #{tpu_custom_call.1} parent=1 // pred_fallthru
      _
    // Predicated region
    $region42: #{tpu_custom_call.1} parent=1 // pred_check
      _
    $region43: #{tpu_custom_call.1} parent=1 // pred_check_branch
      %192 = sbr.rel (0) target = $region45
    $region44: #{tpu_custom_call.1} parent=1 // pred_region
      %194 = vsyncadd [#allocation5], 0
      %s196 = sshll.u32 [#allocation4], 4
      %s197 = int_to_ptr.vmem [resolvable:$true] %s196
      %s198 = sshll.u32 %s10, 4
      %s199 = int_to_ptr.hbm [resolvable:$true] %s198
      %201 = dma.vmem_to_hbm [thread:$0]  %s197, 128, %s199, [#allocation5]
    $region45: #{tpu_custom_call.1} parent=1 // pred_fallthru
      _
    // Predicated region
    $region46: #{tpu_custom_call.1} parent=1 // pred_check
      _
    $region47: #{tpu_custom_call.1} parent=1 // pred_check_branch
      %203 = sbr.rel (0) target = $region49
    $region48: #{tpu_custom_call.1} parent=1 // pred_region
      _
    $region49: #{tpu_custom_call.1} parent=1 // pred_fallthru
      _
    // Predicated region
    $region50: #{tpu_custom_call.1} parent=1 // pred_check
      _
    $region51: #{tpu_custom_call.1} parent=1 // pred_check_branch
      %205 = sbr.rel (0) target = $region53
    $region52: #{tpu_custom_call.1} parent=1 // pred_region
      %207 = dma.done [#allocation3], 128
    $region53: #{tpu_custom_call.1} parent=1 // pred_fallthru
      _
    // Predicated region
    $region54: #{tpu_custom_call.1} parent=1 // pred_check
      _
    $region55: #{tpu_custom_call.1} parent=1 // pred_check_branch
      %209 = sbr.rel (0) target = $region57
    $region56: #{tpu_custom_call.1} parent=1 // pred_region
      %211 = dma.done [#allocation5], 128
    $region57: #{tpu_custom_call.1} parent=1 // pred_fallthru
      _
    // Predicated region
    $region58: #{tpu_custom_call.1} parent=1 // pred_check
      _
    $region59: #{tpu_custom_call.1} parent=1 // pred_check_branch
      %213 = sbr.rel (0) target = $region61
    $region60: #{tpu_custom_call.1} parent=1 // pred_region
      _
    $region61: #{tpu_custom_call.1} parent=1 // pred_fallthru
      _
    %214 = vsyncpa [#allocation3], 1
    %215 = vsyncpa [#allocation5], 1

</llo_original>
